<compile_context>
chip_gen: v6e
topology: v6e:2x2x1
jax: 0.10.0
libtpu: 0.0.40
codegen_flags: <defaults>
</compile_context>

<pallas_src>
import functools

import jax
import jax.numpy as jnp
from jax.experimental import pallas as pl
from jax.experimental.pallas import tpu as pltpu


def _keep_threshold_u16(keep_prob):
    # uint16 threshold such that P(u16 < threshold) ~= keep_prob.
    return min(int(round(keep_prob * 65536.0)), 65535)


def _choose_block_s(S, row_bytes, target_bytes=2 * 1024 * 1024):
    """Rows of x per tile: multiple of 8 (or == S), ~target_bytes of x per
    tile, and at least two S-blocks when S > 8 (v7x megacore sharding)."""
    if S <= 8:
        return S
    bs = min(S, max(8, target_bytes // max(row_bytes, 1)))
    bs = max(8, (bs // 8) * 8)
    if bs >= S:  # force >= 2 grid steps along the parallel S axis
        bs = max(8, ((-(-S // 2) + 7) // 8) * 8)
    return bs


def _locked_dropout_kernel_2d(x_ref, bits_ref, o_ref, *, threshold, inv_keep):
    # x_ref / o_ref: (block_s, H) dense tile of the (S, B*H)-reshaped input.
    # bits_ref: (block_s, H) uint16, shared across the batch grid axis.
    keep = bits_ref[...].astype(jnp.int32) < threshold
    mask = jnp.where(keep,
                     jnp.asarray(inv_keep, dtype=o_ref.dtype),
                     jnp.asarray(0, dtype=o_ref.dtype))
    o_ref[...] = x_ref[...] * mask


def _locked_dropout_kernel_3d(x_ref, bits_ref, o_ref, *, threshold, inv_keep):
    # Fallback path: x_ref / o_ref: (block_s, B, H); bits_ref: (block_s, H).
    keep = bits_ref[...].astype(jnp.int32) < threshold
    mask = jnp.where(keep,
                     jnp.asarray(inv_keep, dtype=o_ref.dtype),
                     jnp.asarray(0, dtype=o_ref.dtype))
    o_ref[...] = x_ref[...] * mask[:, None, :]


def locked_dropout(x, *, dropout, key, training=True, donate=False):
    """Pallas LockedDropout forward.

    Args:
      x: (S, B, H) array -- same layout as the PyTorch module (mask is per
         (S, H) and shared across dim 1).
      dropout: python float in [0, 1), the drop probability.
      key: jax PRNG key used to sample the locked mask.
      training: if False, returns x unchanged (nn.Module eval mode).
      donate: if True, alias x into the output (only when caller no longer
        needs x; LockedDropout's backward only needs the mask).
    """
    if not training or dropout == 0.0:
        return x

    S, B, H = x.shape
    keep_prob = 1.0 - float(dropout)
    inv_keep = 1.0 / keep_prob
    threshold = _keep_threshold_u16(keep_prob)

    # One uint16 word per mask element (tiny sideband: S*H*2 bytes).
    bits = jax.random.bits(key, (S, H), dtype=jnp.uint16)

    dtype_bytes = jnp.dtype(x.dtype).itemsize
    cost = pl.CostEstimate(
        flops=2 * S * B * H,
        transcendentals=0,
        bytes_accessed=2 * S * B * H * dtype_bytes + S * H * 2)
    io_alias = {0: 0} if donate else {}

    if H % 128 == 0:
        # Lane/sublane-dense path: view x as (S, B*H); grid = (S-blocks, B).
        block_s = _choose_block_s(S, H * dtype_bytes)
        grid = (pl.cdiv(S, block_s), B)
        kernel = functools.partial(_locked_dropout_kernel_2d,
                                   threshold=threshold, inv_keep=inv_keep)
        x2d = x.reshape(S, B * H)
        out2d = pl.pallas_call(
            kernel,
            out_shape=jax.ShapeDtypeStruct((S, B * H), x.dtype),
            grid=grid,
            in_specs=[
                # x tile: rows [i*block_s, ...), lanes [b*H, (b+1)*H)
                pl.BlockSpec((block_s, H), lambda i, b: (i, b)),
                # mask bits: independent of b (fast axis) -> DMAed once per i
                pl.BlockSpec((block_s, H), lambda i, b: (i, 0)),
            ],
            out_specs=pl.BlockSpec((block_s, H), lambda i, b: (i, b)),
            compiler_params=pltpu.CompilerParams(
                dimension_semantics=("parallel", "parallel")),
            cost_estimate=cost,
            input_output_aliases=io_alias,
        )(x2d, bits)
        return out2d.reshape(S, B, H)

    # Fallback (H not a multiple of 128): full (B, H) per block, mask
    # broadcast over the batch axis inside the kernel.
    # TODO(synk): for ragged H with very large B*H, also tile the lane axis
    # (fold B into lanes) to keep stores dense; not needed for typical shapes.
    block_s = _choose_block_s(S, B * H * dtype_bytes)
    grid = (pl.cdiv(S, block_s),)
    kernel = functools.partial(_locked_dropout_kernel_3d,
                               threshold=threshold, inv_keep=inv_keep)
    return pl.pallas_call(
        kernel,
        out_shape=jax.ShapeDtypeStruct((S, B, H), x.dtype),
        grid=grid,
        in_specs=[
            pl.BlockSpec((block_s, B, H), lambda i: (i, 0, 0)),
            pl.BlockSpec((block_s, H), lambda i: (i, 0)),
        ],
        out_specs=pl.BlockSpec((block_s, B, H), lambda i: (i, 0, 0)),
        compiler_params=pltpu.CompilerParams(
            dimension_semantics=("parallel",)),
        cost_estimate=cost,
        input_output_aliases=io_alias,
    )(x, bits)


if __name__ == "__main__":
    root = jax.random.PRNGKey(0)
    k_x, k_mask, k_x2 = jax.random.split(root, 3)

    dropout_p = 0.3
    keep_prob = 1.0 - dropout_p
    threshold = _keep_threshold_u16(keep_prob)

    # ---- Primary (lane-dense 2D) path: H multiple of 128, tiled S axis ----
    S, B, H = 16, 4, 128
    x = jax.random.normal(k_x, (S, B, H), dtype=jnp.float32)

    y = locked_dropout(x, dropout=dropout_p, key=k_mask, training=True)
    y = jax.block_until_ready(y)

    # Reference: rebuild the exact same mask from the same key / threshold.
    bits_ref = jax.random.bits(k_mask, (S, H), dtype=jnp.uint16)
    mask_ref = jnp.where(bits_ref.astype(jnp.int32) < threshold,
                         jnp.float32(1.0 / keep_prob), jnp.float32(0.0))
    y_ref = x * mask_ref[:, None, :]

    assert y.shape == x.shape and y.dtype == x.dtype
    assert bool(jnp.allclose(y, y_ref, rtol=1e-6, atol=1e-6))
    # Locked-dropout property: zero pattern identical across the batch axis.
    zeros = (y == 0.0)
    assert bool(jnp.all(zeros == zeros[:, :1, :]))

    # Eval mode is identity.
    y_eval = locked_dropout(x, dropout=dropout_p, key=k_mask, training=False)
    assert bool(jnp.array_equal(y_eval, x))

    # ---- Fallback (3D) path: H not a multiple of 128 ----
    S2, B2, H2 = 8, 2, 96
    x2 = jax.random.normal(k_x2, (S2, B2, H2), dtype=jnp.float32)
    y2 = jax.block_until_ready(
        locked_dropout(x2, dropout=dropout_p, key=k_mask, training=True))
    bits2 = jax.random.bits(k_mask, (S2, H2), dtype=jnp.uint16)
    mask2 = jnp.where(bits2.astype(jnp.int32) < threshold,
                      jnp.float32(1.0 / keep_prob), jnp.float32(0.0))
    assert bool(jnp.allclose(y2, x2 * mask2[:, None, :], rtol=1e-6, atol=1e-6))

    print("KERNEL_OK")
</pallas_src>

<mosaic_0001>
module attributes {stable_mosaic.version = 11 : i64} {
  func.func @_locked_dropout_kernel_2d(%arg0: i32, %arg1: i32, %arg2: memref<8x128xf32, #tpu.memory_space<vmem>>, %arg3: memref<8x128xi16, #tpu.memory_space<vmem>>, %arg4: memref<8x128xf32, #tpu.memory_space<vmem>>) attributes {dimension_semantics = [#tpu.dimension_semantics<parallel>, #tpu.dimension_semantics<parallel>], iteration_bounds = array<i64: 2, 4>, scalar_prefetch = 0 : i64, scratch_operands = 0 : i64, tpu.core_type = #tpu.core_type<tc>, window_params = [{transform_indices = @transform_0, window_bounds = array<i64: 8, 128>}, {transform_indices = @transform_1, window_bounds = array<i64: 8, 128>}, {transform_indices = @transform_2, window_bounds = array<i64: 8, 128>}]} {
    %c0 = arith.constant 0 : index
    %c0_0 = arith.constant 0 : index
    %0 = vector.load %arg3[%c0, %c0_0] : memref<8x128xi16, #tpu.memory_space<vmem>>, vector<8x128xi16>
    %1 = arith.extui %0 : vector<8x128xi16> to vector<8x128xi32>
    %c45875_i32 = arith.constant 45875 : i32
    %2 = vector.broadcast %c45875_i32 : i32 to vector<8x128xi32>
    %3 = arith.cmpi slt, %1, %2 : vector<8x128xi32>
    %cst = arith.constant 1.42857146 : f32
    %cst_1 = arith.constant 0.000000e+00 : f32
    %4 = vector.broadcast %cst : f32 to vector<8x128xf32>
    %5 = vector.broadcast %cst_1 : f32 to vector<8x128xf32>
    %6 = arith.select %3, %4, %5 : vector<8x128xi1>, vector<8x128xf32>
    %c0_2 = arith.constant 0 : index
    %c0_3 = arith.constant 0 : index
    %7 = vector.load %arg2[%c0_2, %c0_3] : memref<8x128xf32, #tpu.memory_space<vmem>>, vector<8x128xf32>
    %8 = arith.mulf %7, %6 : vector<8x128xf32>
    %c0_4 = arith.constant 0 : index
    %c0_5 = arith.constant 0 : index
    %9 = vector.load %arg4[%c0_4, %c0_5] : memref<8x128xf32, #tpu.memory_space<vmem>>, vector<8x128xf32>
    tpu.vector_store %arg4[%c0_4, %c0_5], %8 {strides = array<i32>} : memref<8x128xf32, #tpu.memory_space<vmem>>, vector<8x128xf32>,
    return
  }
  func.func @transform_0(%arg0: i32, %arg1: i32) -> (i32, i32) {
    %c0_i32 = arith.constant 0 : i32
    return %arg0, %arg1 : i32, i32
  }
  func.func @transform_1(%arg0: i32, %arg1: i32) -> (i32, i32) {
    %c0_i32 = arith.constant 0 : i32
    %c0_i32_0 = arith.constant 0 : i32
    return %arg0, %c0_i32 : i32, i32
  }
  func.func @transform_2(%arg0: i32, %arg1: i32) -> (i32, i32) {
    %c0_i32 = arith.constant 0 : i32
    return %arg0, %arg1 : i32, i32
  }
}

</mosaic_0001>

<llo_original>
// kernel: tpu_custom_call.1
$region0: #{tpu_custom_call.1}
  #allocation0 [shape = 'u32[]', space=smem, size = 0x4, offset = 0x4, fixed_abs, tag = 'smem constant byte address 0x4 - core index']
  #allocation1 [shape = 'u32[144,128]{1,0:T(1,128)}', space=vmem, size = 0x12000, scoped, tag = 'internal scratch']
  %s0 = inlined_call_operand.hbm [shape: f32[16,512], index: 0, kind: input, shape index: {}]
  %s1 = inlined_call_operand.hbm [shape: u16[16,128], index: 1, kind: input, shape index: {}]
  %s2 = inlined_call_operand.hbm [shape: f32[16,512], index: 2, kind: output, shape index: {}]
  %s3 = sld [smem:[#allocation0]]
  $region49: #{tpu_custom_call.1} parent=0
    _
  %s5 = ssub.s32 1, %s3
  %s6 = scalar_select 0, %s5, %s3
  $region1: #{tpu_custom_call.1} parent=0
    #allocation2 [shape = 'u8[8192]{0}', space=vmem, size = 0x2000, scoped, tag = 'input window, operand 0']
    #allocation3 [shape = 's32[2]{0}', space=sflag, size = 0x8, scoped, tag = 'scoped memory for tpu_custom_call.1']
    #allocation4 [shape = 's32[2]{0}', space=sflag, size = 0x8, scoped, tag = 'scoped memory for tpu_custom_call.1']
    #allocation5 [shape = 'u8[4096]{0}', space=vmem, size = 0x1000, scoped, tag = 'input window, operand 1']
    #allocation6 [shape = 's32[2]{0}', space=sflag, size = 0x8, scoped, tag = 'scoped memory for tpu_custom_call.1']
    #allocation7 [shape = 'u8[8192]{0}', space=vmem, size = 0x2000, scoped, tag = 'output window, operand 0']
    %7 = vsyncpa [#allocation3], 0
    %s8 = scalar_lea.sflag [#allocation3], 1
    %9 = vsyncpa %s8, 0
    %10 = vsyncpa [#allocation6], 0
    %s11 = scalar_lea.sflag [#allocation6], 1
    %12 = vsyncpa %s11, 0
    %13 = vsyncpa [#allocation4], 0
    %s14 = scalar_lea.sflag [#allocation4], 1
    %15 = vsyncpa %s14, 0
    loop: start=0, step=1, limit=10
    $region2: #{tpu_custom_call.1} parent=1 // loop_pre_header
      _
    $region3: #{tpu_custom_call.1} parent=1 // loop_header
      %s17 = sphi 0, %s21
      %p18 = scmp.ge.s32.totalorder %s17, 10
      %s24 = sphi 0, %s36
      %s25 = sphi 0, %s32
      %s26 = sphi 0, %s24
      %s27 = sphi 0, %s25
      %s28 = sphi 0, %s26
      %s29 = sphi 0, %s27
      %s41 = sphi 0, %s43
      %s44 = sphi 0, %s41
      %s45 = sphi 0, %s44
      %s61 = sphi 0, %s45
      %s67 = sphi 0, %s69
      %s70 = sphi 0, %s67
      %s71 = sphi 0, %s70
      %s87 = sphi 0, %s71
      %s95 = sphi 0, %s97
      %s98 = sphi 0, %s95
      %s99 = sphi 0, %s98
      %s115 = sphi 0, %s99
    $region4: #{tpu_custom_call.1} parent=1 // loop_header_branch
      %20 = sbr.rel (%p18) target = $region8
    $region5: #{tpu_custom_call.1} parent=1 // loop_body
      %s22 = ssub.s32 %s17, 1
      %s23 = ssub.s32 %s17, 2
      %s30 = sadd.s32 1, %s25
      %p31 = scmp.ge.s32.totalorder %s30, 4
      %s32 = scalar_select %p31, 0, %s30
      %s33 = sadd.s32 1, %s24
      %s34 = scalar_select %p31, %s33, %s24
      %p35 = scmp.ge.s32.totalorder %s34, 2
      %s36 = scalar_select %p35, 0, %s34
      %s37 = ssub.s32 %s24, %s36
      %s38 = ssub.s32 %s25, %s32
      %s39 = sor.u32 %s37, %s38
      %p40 = scmp.eq.s32.totalorder %s39, 0
      %s42 = sadd.s32 %s41, 1
      %s43 = scalar_select %p40, %s41, %s42
      %p46 = pneg %p40
      %p47 = scmp.eq.s32.totalorder %s17, 7
      %p48 = por %p46, %p47
      %p49 = scmp.ne.s32.totalorder %s41, %s44
      %p50 = scmp.eq.s32.totalorder %s17, 0
      %p51 = por %p49, %p50
      %p52 = scmp.ne.s32.totalorder %s41, %s44
      %p53 = scmp.eq.s32.totalorder %s22, 7
      %p54 = por %p52, %p53
      %p55 = scmp.ne.s32.totalorder %s44, %s45
      %p56 = scmp.eq.s32.totalorder %s22, 0
      %p57 = por %p55, %p56
      %p58 = scmp.ne.s32.totalorder %s44, %s45
      %p59 = scmp.eq.s32.totalorder %s23, 7
      %p60 = por %p58, %p59
      %p62 = scmp.ne.s32.totalorder %s45, %s61
      %p63 = scmp.eq.s32.totalorder %s23, 0
      %p64 = por %p62, %p63
      %s65 = ssub.s32 %s24, %s36
      %p66 = scmp.eq.s32.totalorder %s65, 0
      %s68 = sadd.s32 %s67, 1
      %s69 = scalar_select %p66, %s67, %s68
      %p72 = pneg %p66
      %p73 = scmp.eq.s32.totalorder %s17, 7
      %p74 = por %p72, %p73
      %p75 = scmp.ne.s32.totalorder %s67, %s70
      %p76 = scmp.eq.s32.totalorder %s17, 0
      %p77 = por %p75, %p76
      %p78 = scmp.ne.s32.totalorder %s67, %s70
      %p79 = scmp.eq.s32.totalorder %s22, 7
      %p80 = por %p78, %p79
      %p81 = scmp.ne.s32.totalorder %s70, %s71
      %p82 = scmp.eq.s32.totalorder %s22, 0
      %p83 = por %p81, %p82
      %p84 = scmp.ne.s32.totalorder %s70, %s71
      %p85 = scmp.eq.s32.totalorder %s23, 7
      %p86 = por %p84, %p85
      %p88 = scmp.ne.s32.totalorder %s71, %s87
      %p89 = scmp.eq.s32.totalorder %s23, 0
      %p90 = por %p88, %p89
      %s91 = ssub.s32 %s24, %s36
      %s92 = ssub.s32 %s25, %s32
      %s93 = sor.u32 %s91, %s92
      %p94 = scmp.eq.s32.totalorder %s93, 0
      %s96 = sadd.s32 %s95, 1
      %s97 = scalar_select %p94, %s95, %s96
      %p100 = pneg %p94
      %p101 = scmp.eq.s32.totalorder %s17, 7
      %p102 = por %p100, %p101
      %p103 = scmp.ne.s32.totalorder %s95, %s98
      %p104 = scmp.eq.s32.totalorder %s17, 0
      %p105 = por %p103, %p104
      %p106 = scmp.ne.s32.totalorder %s95, %s98
      %p107 = scmp.eq.s32.totalorder %s22, 7
      %p108 = por %p106, %p107
      %p109 = scmp.ne.s32.totalorder %s98, %s99
      %p110 = scmp.eq.s32.totalorder %s22, 0
      %p111 = por %p109, %p110
      %p112 = scmp.ne.s32.totalorder %s98, %s99
      %p113 = scmp.eq.s32.totalorder %s23, 7
      %p114 = por %p112, %p113
      %p116 = scmp.ne.s32.totalorder %s99, %s115
      %p117 = scmp.eq.s32.totalorder %s23, 0
      %p118 = por %p116, %p117
      %p119 = scmp.le.s32.totalorder 1, %s17
      %p120 = scmp.lt.s32.totalorder %s17, 9
      %p121 = pnand %p119, %p120
      %p122 = pneg %p121
      // Predicated region
      $region9: #{tpu_custom_call.1} parent=5 // pred_check
        _
      $region10: #{tpu_custom_call.1} parent=5 // pred_check_branch
        %124 = sbr.rel (%p121) target = $region12
      $region11: #{tpu_custom_call.1} parent=5 // pred_region
        %s125 = ssub.s32 %s17, 1
      $region12: #{tpu_custom_call.1} parent=5 // pred_fallthru
        _
      %p126 = scmp.lt.s32.totalorder %s17, 8
      // Predicated region
      $region13: #{tpu_custom_call.1} parent=5 // pred_check
        %p127 = pneg %p126
      $region14: #{tpu_custom_call.1} parent=5 // pred_check_branch
        %129 = sbr.rel (%p127) target = $region16
      $region15: #{tpu_custom_call.1} parent=5 // pred_region
        // Predicated region
        $region17: #{tpu_custom_call.1} parent=15 // pred_check
          %p130 = pneg %p51
        $region18: #{tpu_custom_call.1} parent=15 // pred_check_branch
          %132 = sbr.rel (%p130) target = $region20
        $region19: #{tpu_custom_call.1} parent=15 // pred_region
          %s133 = sand.u32 %s41, 1
          %s134 = scalar_lea.sflag [#allocation3], %s133
          %s135 = sand.u32 %s41, 1
          %s136 = smul.addr %s135, 8
          %s137 = scalar_lea.vmem [#allocation2], %s136
          %s139 = ssub.s32 128, 128
          %140 = vsyncadd %s134, %s139
          %s141 = smul.addr %s24, 4
          %s142 = sadd.s32 %s25, %s141
          %s143 = smul.addr %s142, 128
          %s144 = scalar_lea.hbm %s0, %s143
          %s146 = sshll.u32 %s137, 4
          %s147 = int_to_ptr.vmem [resolvable:$true] %s146
          %149 = dma.hbm_to_vmem [thread:$0]  %s144, 128, %s147, %s134
        $region20: #{tpu_custom_call.1} parent=15 // pred_fallthru
          _
        // Predicated region
        $region21: #{tpu_custom_call.1} parent=15 // pred_check
          %p150 = pneg %p77
        $region22: #{tpu_custom_call.1} parent=15 // pred_check_branch
          %152 = sbr.rel (%p150) target = $region24
        $region23: #{tpu_custom_call.1} parent=15 // pred_region
          %s153 = sand.u32 %s67, 1
          %s154 = scalar_lea.sflag [#allocation6], %s153
          %s155 = sand.u32 %s67, 1
          %s156 = smul.addr %s155, 4
          %s157 = scalar_lea.vmem [#allocation5], %s156
          %s159 = ssub.s32 64, 64
          %160 = vsyncadd %s154, %s159
          %s161 = smul.addr %s24, 64
          %s162 = scalar_lea.hbm %s1, %s161
          %s164 = sshll.u32 %s157, 4
          %s165 = int_to_ptr.vmem [resolvable:$true] %s164
          %167 = dma.hbm_to_vmem [thread:$0]  %s162, 64, %s165, %s154
        $region24: #{tpu_custom_call.1} parent=15 // pred_fallthru
          _
      $region16: #{tpu_custom_call.1} parent=5 // pred_fallthru
        _
      %p168 = scmp.le.s32.totalorder 1, %s17
      %p169 = scmp.lt.s32.totalorder %s17, 9
      %p170 = pnand %p168, %p169
      %p171 = pneg %p170
      // Predicated region
      $region25: #{tpu_custom_call.1} parent=5 // pred_check
        _
      $region26: #{tpu_custom_call.1} parent=5 // pred_check_branch
        %173 = sbr.rel (%p170) target = $region28
      $region27: #{tpu_custom_call.1} parent=5 // pred_region
        %s174 = ssub.s32 %s17, 1
        %s175 = sand.u32 %s44, 1
        %s176 = scalar_lea.sflag [#allocation3], %s175
        %s177 = sand.u32 %s44, 1
        %s178 = smul.addr %s177, 8
        %s179 = scalar_lea.vmem [#allocation2], %s178
        // Predicated region
        $region29: #{tpu_custom_call.1} parent=27 // pred_check
          %p180 = pneg %p57
        $region30: #{tpu_custom_call.1} parent=27 // pred_check_branch
          %182 = sbr.rel (%p180) target = $region32
        $region31: #{tpu_custom_call.1} parent=27 // pred_region
          %183 = dma.done %s176, 128
        $region32: #{tpu_custom_call.1} parent=27 // pred_fallthru
          _
        %s184 = sand.u32 %s70, 1
        %s185 = scalar_lea.sflag [#allocation6], %s184
        %s186 = sand.u32 %s70, 1
        %s187 = smul.addr %s186, 4
        %s188 = scalar_lea.vmem [#allocation5], %s187
        // Predicated region
        $region33: #{tpu_custom_call.1} parent=27 // pred_check
          %p189 = pneg %p83
        $region34: #{tpu_custom_call.1} parent=27 // pred_check_branch
          %191 = sbr.rel (%p189) target = $region36
        $region35: #{tpu_custom_call.1} parent=27 // pred_region
          %192 = dma.done %s185, 64
        $region36: #{tpu_custom_call.1} parent=27 // pred_fallthru
          _
        %s193 = sand.u32 %s44, 1
        %s194 = scalar_lea.sflag [#allocation3], %s193
        %s195 = sand.u32 %s44, 1
        %s196 = smul.addr %s195, 8
        %s197 = scalar_lea.vmem [#allocation2], %s196
        %p198 = pneg %p57
        %p199 = pneg %p54
        %s200 = sand.u32 %s70, 1
        %s201 = scalar_lea.sflag [#allocation6], %s200
        %s202 = sand.u32 %s70, 1
        %s203 = smul.addr %s202, 4
        %s204 = scalar_lea.vmem [#allocation5], %s203
        %p205 = pneg %p83
        %p206 = pneg %p80
        %p207 = pneg %p111
        %p208 = pneg %p108
        %s209 = sand.u32 %s98, 1
        %s210 = scalar_lea.sflag [#allocation4], %s209
        %s211 = sand.u32 %s98, 1
        %s212 = smul.addr %s211, 8
        %s213 = scalar_lea.vmem [#allocation7], %s212
        %v214 = vld [vmem:[%s188] sm:$0xf]
        %v215 = vunpack.c.l.b16 %v214
        %v216 = vand.u32 %v215, 65535
        %vm217 = vcmp.lt.s32.totalorder %v216, 45875
        %v218 = vsel %vm217, 1.4285715, 0.0
        %v219 = vld [vmem:[%s179] sm:$0xff]
        %v220 = vmul.f32 %v219, %v218
        %221 = vst [vmem:[%s213] sm:$0xff] %v220
        %s222 = sand.u32 %s98, 1
        %s223 = scalar_lea.sflag [#allocation4], %s222
        %s224 = sand.u32 %s98, 1
        %s225 = smul.addr %s224, 8
        %s226 = scalar_lea.vmem [#allocation7], %s225
        // Predicated region
        $region37: #{tpu_custom_call.1} parent=27 // pred_check
          %p227 = pneg %p108
        $region38: #{tpu_custom_call.1} parent=27 // pred_check_branch
          %229 = sbr.rel (%p227) target = $region40
        $region39: #{tpu_custom_call.1} parent=27 // pred_region
          %s231 = ssub.s32 128, 128
          %232 = vsyncadd %s223, %s231
          %s233 = smul.addr %s26, 4
          %s234 = sadd.s32 %s27, %s233
          %s235 = smul.addr %s234, 128
          %s236 = scalar_lea.hbm %s2, %s235
          %s238 = sshll.u32 %s226, 4
          %s239 = int_to_ptr.vmem [resolvable:$true] %s238
          %241 = dma.vmem_to_hbm [thread:$0]  %s239, 128, %s236, %s223
        $region40: #{tpu_custom_call.1} parent=27 // pred_fallthru
          _
      $region28: #{tpu_custom_call.1} parent=5 // pred_fallthru
        _
      %p242 = scmp.le.s32.totalorder 2, %s17
      // Predicated region
      $region41: #{tpu_custom_call.1} parent=5 // pred_check
        %p243 = pneg %p242
      $region42: #{tpu_custom_call.1} parent=5 // pred_check_branch
        %245 = sbr.rel (%p243) target = $region44
      $region43: #{tpu_custom_call.1} parent=5 // pred_region
        %s246 = ssub.s32 %s17, 2
        // Predicated region
        $region45: #{tpu_custom_call.1} parent=43 // pred_check
          %p247 = pneg %p114
        $region46: #{tpu_custom_call.1} parent=43 // pred_check_branch
          %249 = sbr.rel (%p247) target = $region48
        $region47: #{tpu_custom_call.1} parent=43 // pred_region
          %s250 = sand.u32 %s99, 1
          %s251 = scalar_lea.sflag [#allocation4], %s250
          %s252 = sand.u32 %s99, 1
          %s253 = smul.addr %s252, 8
          %s254 = scalar_lea.vmem [#allocation7], %s253
          %255 = dma.done %s251, 128
        $region48: #{tpu_custom_call.1} parent=43 // pred_fallthru
          _
      $region44: #{tpu_custom_call.1} parent=5 // pred_fallthru
        _
    $region6: #{tpu_custom_call.1} parent=1 // loop_footer
      %s21 = sadd.s32 1, %s17
    $region7: #{tpu_custom_call.1} parent=1 // loop_footer_branch
      %16 = sbr.rel target = $region3
    $region8: #{tpu_custom_call.1} parent=1 // loop_exit
      _
    %256 = vsyncpa [#allocation3], 1
    %s257 = scalar_lea.sflag [#allocation3], 1
    %258 = vsyncpa %s257, 1
    %259 = vsyncpa [#allocation6], 1
    %s260 = scalar_lea.sflag [#allocation6], 1
    %261 = vsyncpa %s260, 1
    %262 = vsyncpa [#allocation4], 1
    %s263 = scalar_lea.sflag [#allocation4], 1
    %264 = vsyncpa %s263, 1

</llo_original>
